<compile_context>
chip_gen: v7x
topology: tpu7x:2x2x1
jax: 0.10.0
libtpu: 0.0.40
codegen_flags: <defaults>
</compile_context>

<pallas_src>
import functools

import jax
import jax.numpy as jnp
from jax.experimental import pallas as pl
from jax.experimental.pallas import tpu as pltpu


def _round_up(x, m):
    return (x + m - 1) // m * m


def _vmem_capacity_bytes():
    """Per-generation VMEM: 128 MiB on v5e/v6e, 64 MiB per TensorCore on v7x."""
    try:
        info = pltpu.get_tpu_info()
        cap = getattr(info, "vmem_capacity_bytes", None)
        if cap:
            return int(cap)
    except Exception:
        pass
    return 64 * 1024 * 1024  # conservative fallback (v7x per-TC)


# ----------------------------------------------------------------------------
# Kernels
# ----------------------------------------------------------------------------
def ffn_kernel_resident(x_ref, w1_ref, b1_ref, w2_ref, b2_ref, o_ref):
    """Weights fully VMEM-resident; grid = (row_tile i,). No scratch needed."""
    x = x_ref[...].astype(w1_ref.dtype)                       # cast to MXU dtype in-kernel
    h = jnp.dot(x, w1_ref[...], preferred_element_type=jnp.float32)
    h = jnp.maximum(h + b1_ref[...], 0.0)                     # bias + ReLU in f32
    # dropout: identity (inference).
    # TODO(synk): training-mode dropout mask not implemented.
    y = jnp.dot(h.astype(w2_ref.dtype), w2_ref[...],
                preferred_element_type=jnp.float32)
    o_ref[...] = (y + b2_ref[...]).astype(o_ref.dtype)


def ffn_kernel_streamed(x_ref, w1_ref, b1_ref, w2_ref, b2_ref, o_ref, acc_ref):
    """Grid = (row_tile i [parallel], d_ff tile j [arbitrary/reduction])."""
    j = pl.program_id(1)

    @pl.when(j == 0)
    def _():
        acc_ref[...] = jnp.zeros_like(acc_ref)

    x = x_ref[...].astype(w1_ref.dtype)
    # First matmul slice: (TN, d_model) x (d_model, TF) -> f32 (TN, TF)
    h = jnp.dot(x, w1_ref[...], preferred_element_type=jnp.float32)
    h = jnp.maximum(h + b1_ref[...], 0.0)                     # bias + ReLU in f32
    # dropout: identity (inference)
    # Second matmul slice accumulates over d_ff tiles into f32 scratch.
    acc_ref[...] += jnp.dot(h.astype(w2_ref.dtype), w2_ref[...],
                            preferred_element_type=jnp.float32)

    @pl.when(j == pl.num_programs(1) - 1)
    def _():
        o_ref[...] = (acc_ref[...] + b2_ref[...]).astype(o_ref.dtype)


# ----------------------------------------------------------------------------
# Wrapper
# ----------------------------------------------------------------------------
@functools.partial(jax.jit, static_argnames=("block_rows", "block_ff",
                                             "compute_dtype"))
def positionwise_ffn(x, w1, b1, w2, b2, *, block_rows=512, block_ff=512,
                     compute_dtype=jnp.bfloat16):
    """x: [B, S, d_model]; w1: [d_model, d_ff]; w2: [d_ff, d_model]."""
    B, S, d_model = x.shape
    d_ff = w1.shape[1]
    N = B * S

    # Lane-dense padded sizes. d_ff is padded to a multiple of 256 so reduction
    # tiles fill the 256x256 MXU on v6e/v7x (harmless on v5e's 128x128 MXUs).
    d_model_p = _round_up(d_model, 128)
    d_ff_p = _round_up(d_ff, 256)

    x_size = jnp.dtype(x.dtype).itemsize
    out_size = x_size
    cdt_size = jnp.dtype(compute_dtype).itemsize

    # ---- row tile (multiple of 16 for bf16 sublane packing) -----------------
    tn = min(block_rows, _round_up(N, 16))
    # Give the megacore (v7x: 2 TCs) at least 2 row tiles when there is work.
    if (N + tn - 1) // tn == 1 and N > 16:
        tn = _round_up((N + 1) // 2, 16)

    # ---- VMEM budget / path selection ---------------------------------------
    vmem_cap = _vmem_capacity_bytes()
    budget = int(vmem_cap * 0.8)

    def resident_bytes(t):
        weights = 2 * d_model_p * d_ff_p * cdt_size            # w1+w2, Buffered(1)
        biases = (d_ff_p + d_model_p) * 4
        x_buf = 2 * t * d_model_p * x_size                      # double-buffered in
        o_buf = 2 * t * d_model_p * out_size                    # double-buffered out
        tmps = t * d_ff_p * (4 + cdt_size) + t * d_model_p * (4 + cdt_size)
        return weights + biases + x_buf + o_buf + tmps

    def streamed_bytes(t, tf_, wbuf):
        weights = wbuf * 2 * d_model_p * tf_ * cdt_size
        biases = 2 * tf_ * 4 + d_model_p * 4
        x_buf = 2 * t * d_model_p * x_size
        o_buf = 2 * t * d_model_p * out_size
        acc = t * d_model_p * 4
        tmps = t * tf_ * (4 + cdt_size) + t * d_model_p * (4 + cdt_size)
        return weights + biases + x_buf + o_buf + acc + tmps

    tn_res = tn
    while tn_res > 64 and resident_bytes(tn_res) > budget:
        tn_res = max(64, _round_up((tn_res + 1) // 2, 16))
    resident = resident_bytes(tn_res) <= budget

    w_buffers = 2
    if resident:
        tn = tn_res
        tf = d_ff_p
        footprint = resident_bytes(tn)
    else:
        tf = block_ff if (block_ff % 256 == 0 and d_ff_p % block_ff == 0) else 256
        while tn > 64 and streamed_bytes(tn, tf, 2) > budget:
            tn = max(64, _round_up((tn + 1) // 2, 16))
        # Extra weight-slice buffer hides exposed DMA on the borderline
        # memory-bound steps (cheap on v5e/v6e; only if it fits the budget).
        if streamed_bytes(tn, tf, 3) <= budget:
            w_buffers = 3
        footprint = streamed_bytes(tn, tf, w_buffers)

    n_p = _round_up(N, tn)
    num_row_tiles = n_p // tn

    # ---- pad / cast only when needed ----------------------------------------
    # x stays in its native dtype (cast to bf16 happens inside the kernel, so
    # there is no extra HBM pass over the activation slab in the aligned case).
    x2d = x.reshape(N, d_model)
    if (n_p, d_model_p) != (N, d_model):
        x2d = jnp.pad(x2d, ((0, n_p - N), (0, d_model_p - d_model)))
    w1p = w1 if w1.dtype == compute_dtype else w1.astype(compute_dtype)
    w2p = w2 if w2.dtype == compute_dtype else w2.astype(compute_dtype)
    if (d_model_p, d_ff_p) != (d_model, d_ff):
        w1p = jnp.pad(w1p, ((0, d_model_p - d_model), (0, d_ff_p - d_ff)))
        w2p = jnp.pad(w2p, ((0, d_ff_p - d_ff), (0, d_model_p - d_model)))
    b1p = b1.astype(jnp.float32)
    b2p = b2.astype(jnp.float32)
    if d_ff_p != d_ff:
        b1p = jnp.pad(b1p, (0, d_ff_p - d_ff))
    if d_model_p != d_model:
        b2p = jnp.pad(b2p, (0, d_model_p - d_model))
    b1p = b1p.reshape(1, d_ff_p)
    b2p = b2p.reshape(1, d_model_p)

    # ---- cost estimate (account for weight re-streaming on the tiled path) --
    flops = 4 * n_p * d_model_p * d_ff_p                       # two matmuls
    weight_reads = 1 if resident else num_row_tiles
    bytes_accessed = (x_size * n_p * d_model_p
                      + weight_reads * cdt_size * 2 * d_model_p * d_ff_p
                      + 4 * (d_ff_p + d_model_p)
                      + out_size * n_p * d_model_p)

    # vmem limit from actual footprint + headroom, capped under physical VMEM.
    vmem_limit = max(32 * 1024 * 1024, int(footprint * 1.4))
    vmem_limit = min(vmem_limit, int(vmem_cap * 0.9))

    if resident:
        const_mode = pl.Buffered(1)   # constant-index blocks: no double-buffer
        grid_spec = pltpu.PrefetchScalarGridSpec(
            num_scalar_prefetch=0,
            grid=(num_row_tiles,),
            in_specs=[
                pl.BlockSpec((tn, d_model_p), lambda i: (i, 0)),
                pl.BlockSpec((d_model_p, d_ff_p), lambda i: (0, 0),
                             pipeline_mode=const_mode),
                pl.BlockSpec((1, d_ff_p), lambda i: (0, 0),
                             pipeline_mode=const_mode),
                pl.BlockSpec((d_ff_p, d_model_p), lambda i: (0, 0),
                             pipeline_mode=const_mode),
                pl.BlockSpec((1, d_model_p), lambda i: (0, 0),
                             pipeline_mode=const_mode),
            ],
            out_specs=pl.BlockSpec((tn, d_model_p), lambda i: (i, 0)),
        )
        kernel = ffn_kernel_resident
        dim_sem = ("parallel",)
    else:
        w_mode = pl.Buffered(w_buffers)
        grid_spec = pltpu.PrefetchScalarGridSpec(
            num_scalar_prefetch=0,
            grid=(num_row_tiles, d_ff_p // tf),
            in_specs=[
                pl.BlockSpec((tn, d_model_p), lambda i, j: (i, 0)),
                pl.BlockSpec((d_model_p, tf), lambda i, j: (0, j),
                             pipeline_mode=w_mode),
                pl.BlockSpec((1, tf), lambda i, j: (0, j)),
                pl.BlockSpec((tf, d_model_p), lambda i, j: (j, 0),
                             pipeline_mode=w_mode),
                pl.BlockSpec((1, d_model_p), lambda i, j: (0, 0)),
            ],
            out_specs=pl.BlockSpec((tn, d_model_p), lambda i, j: (i, 0)),
            scratch_shapes=[pltpu.VMEM((tn, d_model_p), jnp.float32)],
        )
        kernel = ffn_kernel_streamed
        dim_sem = ("parallel", "arbitrary")

    out_p = pl.pallas_call(
        kernel,
        out_shape=jax.ShapeDtypeStruct((n_p, d_model_p), x.dtype),
        grid_spec=grid_spec,
        compiler_params=pltpu.CompilerParams(
            dimension_semantics=dim_sem,
            vmem_limit_bytes=vmem_limit,
        ),
        cost_estimate=pl.CostEstimate(
            flops=flops, transcendentals=0, bytes_accessed=bytes_accessed),
    )(x2d, w1p, b1p, w2p, b2p)

    out = out_p
    if (n_p, d_model_p) != (N, d_model):
        out = out[:N, :d_model]
    return out.reshape(B, S, d_model)


def _reference(x, w1, b1, w2, b2, compute_dtype=jnp.bfloat16):
    # Same numerics as the kernel: bf16 operands, f32 accumulation, f32 epilogue.
    xc = x.astype(compute_dtype)
    w1c = w1.astype(compute_dtype)
    w2c = w2.astype(compute_dtype)
    h = jnp.einsum("bsd,df->bsf", xc, w1c,
                   preferred_element_type=jnp.float32) + b1
    h = jnp.maximum(h, 0.0)
    y = jnp.einsum("bsf,fd->bsd", h.astype(compute_dtype), w2c,
                   preferred_element_type=jnp.float32) + b2
    return y.astype(x.dtype)


if __name__ == "__main__":
    B, S, d_model, d_ff = 2, 8, 32, 64

    key = jax.random.PRNGKey(0)
    kx, kw1, kb1, kw2, kb2 = jax.random.split(key, 5)

    x = jax.random.normal(kx, (B, S, d_model), dtype=jnp.float32)

    # PyTorch Linear.weight is (out, in); generate at that shape then transpose
    # to the (in, out) layout the kernel consumes.
    w1_pt = jax.random.normal(kw1, (d_ff, d_model), dtype=jnp.float32) * 0.05
    b1 = jax.random.normal(kb1, (d_ff,), dtype=jnp.float32) * 0.05
    w2_pt = jax.random.normal(kw2, (d_model, d_ff), dtype=jnp.float32) * 0.05
    b2 = jax.random.normal(kb2, (d_model,), dtype=jnp.float32) * 0.05
    w1 = w1_pt.T  # (d_model, d_ff)
    w2 = w2_pt.T  # (d_ff, d_model)

    out = positionwise_ffn(x, w1, b1, w2, b2)
    out = jax.block_until_ready(out)

    ref = _reference(x, w1, b1, w2, b2)
    assert out.shape == (B, S, d_model)
    assert jnp.allclose(out, ref, atol=2e-2, rtol=2e-2), "mismatch vs reference"

    print("KERNEL_OK")
</pallas_src>

<mosaic_0001>
module attributes {stable_mosaic.version = 11 : i64} {
  func.func @ffn_kernel_resident(%arg0: i32, %arg1: memref<16x128xf32, #tpu.memory_space<vmem>>, %arg2: memref<128x256xbf16, #tpu.memory_space<vmem>>, %arg3: memref<1x256xf32, #tpu.memory_space<vmem>>, %arg4: memref<256x128xbf16, #tpu.memory_space<vmem>>, %arg5: memref<1x128xf32, #tpu.memory_space<vmem>>, %arg6: memref<16x128xf32, #tpu.memory_space<vmem>>) attributes {dimension_semantics = [#tpu.dimension_semantics<parallel>], iteration_bounds = array<i64: 1>, scalar_prefetch = 0 : i64, scratch_operands = 0 : i64, tpu.core_type = #tpu.core_type<tc>, window_params = [{transform_indices = @transform_0, window_bounds = array<i64: 16, 128>}, {pipeline_mode = #tpu.pipeline_mode<synchronous>, transform_indices = @transform_1, window_bounds = array<i64: 128, 256>}, {pipeline_mode = #tpu.pipeline_mode<synchronous>, transform_indices = @transform_2, window_bounds = array<i64: 1, 256>}, {pipeline_mode = #tpu.pipeline_mode<synchronous>, transform_indices = @transform_3, window_bounds = array<i64: 256, 128>}, {pipeline_mode = #tpu.pipeline_mode<synchronous>, transform_indices = @transform_4, window_bounds = array<i64: 1, 128>}, {transform_indices = @transform_5, window_bounds = array<i64: 16, 128>}]} {
    %c0 = arith.constant 0 : index
    %c0_0 = arith.constant 0 : index
    %0 = vector.load %arg1[%c0, %c0_0] : memref<16x128xf32, #tpu.memory_space<vmem>>, vector<16x128xf32>
    %1 = arith.truncf %0 : vector<16x128xf32> to vector<16x128xbf16>
    %c0_1 = arith.constant 0 : index
    %c0_2 = arith.constant 0 : index
    %2 = vector.load %arg2[%c0_1, %c0_2] : memref<128x256xbf16, #tpu.memory_space<vmem>>, vector<128x256xbf16>
    %cst = arith.constant dense<0.000000e+00> : vector<16x256xf32>
    %3 = tpu.matmul %1, %2, %cst {dimension_numbers = #tpu.dot_dimension_numbers<[1], [0], [0], [1], [0, 0, 1, 1], [], []>} : vector<16x128xbf16>, vector<128x256xbf16>, vector<16x256xf32> -> vector<16x256xf32>
    %c0_3 = arith.constant 0 : index
    %c0_4 = arith.constant 0 : index
    %4 = vector.load %arg3[%c0_3, %c0_4] : memref<1x256xf32, #tpu.memory_space<vmem>>, vector<1x256xf32>
    %5 = vector.broadcast %4 : vector<1x256xf32> to vector<16x256xf32>
    %6 = arith.addf %3, %5 : vector<16x256xf32>
    %cst_5 = arith.constant 0.000000e+00 : f32
    %7 = vector.broadcast %cst_5 : f32 to vector<16x256xf32>
    %8 = arith.maximumf %6, %7 : vector<16x256xf32>
    %9 = arith.truncf %8 : vector<16x256xf32> to vector<16x256xbf16>
    %c0_6 = arith.constant 0 : index
    %c0_7 = arith.constant 0 : index
    %10 = vector.load %arg4[%c0_6, %c0_7] : memref<256x128xbf16, #tpu.memory_space<vmem>>, vector<256x128xbf16>
    %cst_8 = arith.constant dense<0.000000e+00> : vector<16x128xf32>
    %11 = tpu.matmul %9, %10, %cst_8 {dimension_numbers = #tpu.dot_dimension_numbers<[1], [0], [0], [1], [0, 0, 1, 1], [], []>} : vector<16x256xbf16>, vector<256x128xbf16>, vector<16x128xf32> -> vector<16x128xf32>
    %c0_9 = arith.constant 0 : index
    %c0_10 = arith.constant 0 : index
    %12 = vector.load %arg5[%c0_9, %c0_10] : memref<1x128xf32, #tpu.memory_space<vmem>>, vector<1x128xf32>
    %13 = vector.broadcast %12 : vector<1x128xf32> to vector<16x128xf32>
    %14 = arith.addf %11, %13 : vector<16x128xf32>
    %c0_11 = arith.constant 0 : index
    %c0_12 = arith.constant 0 : index
    %15 = vector.load %arg6[%c0_11, %c0_12] : memref<16x128xf32, #tpu.memory_space<vmem>>, vector<16x128xf32>
    tpu.vector_store %arg6[%c0_11, %c0_12], %14 {strides = array<i32>} : memref<16x128xf32, #tpu.memory_space<vmem>>, vector<16x128xf32>,
    return
  }
  func.func @transform_0(%arg0: i32) -> (i32, i32) {
    %c0_i32 = arith.constant 0 : i32
    %c0_i32_0 = arith.constant 0 : i32
    return %arg0, %c0_i32 : i32, i32
  }
  func.func @transform_1(%arg0: i32) -> (i32, i32) {
    %c0_i32 = arith.constant 0 : i32
    %c0_i32_0 = arith.constant 0 : i32
    %c0_i32_1 = arith.constant 0 : i32
    return %c0_i32, %c0_i32_0 : i32, i32
  }
  func.func @transform_2(%arg0: i32) -> (i32, i32) {
    %c0_i32 = arith.constant 0 : i32
    %c0_i32_0 = arith.constant 0 : i32
    %c0_i32_1 = arith.constant 0 : i32
    return %c0_i32, %c0_i32_0 : i32, i32
  }
  func.func @transform_3(%arg0: i32) -> (i32, i32) {
    %c0_i32 = arith.constant 0 : i32
    %c0_i32_0 = arith.constant 0 : i32
    %c0_i32_1 = arith.constant 0 : i32
    return %c0_i32, %c0_i32_0 : i32, i32
  }
  func.func @transform_4(%arg0: i32) -> (i32, i32) {
    %c0_i32 = arith.constant 0 : i32
    %c0_i32_0 = arith.constant 0 : i32
    %c0_i32_1 = arith.constant 0 : i32
    return %c0_i32, %c0_i32_0 : i32, i32
  }
  func.func @transform_5(%arg0: i32) -> (i32, i32) {
    %c0_i32 = arith.constant 0 : i32
    %c0_i32_0 = arith.constant 0 : i32
    return %arg0, %c0_i32 : i32, i32
  }
}

</mosaic_0001>

<llo_original>
// kernel: positionwise_ffn.1
$region0: #{positionwise_ffn.1}
  #allocation0 [shape = 'u32[]', space=smem, size = 0x4, offset = 0x4, fixed_abs, tag = 'smem constant byte address 0x4 - core index']
  #allocation1 [shape = 'u32[144,128]{1,0:T(1,128)}', space=vmem, size = 0x12000, scoped, tag = 'internal scratch']
  %s0 = inlined_call_operand.vmem [shape: f32[16,128], index: 0, kind: input, shape index: {}]
  %s1 = inlined_call_operand.vmem [shape: bf16[128,256], index: 1, kind: input, shape index: {}]
  %s2 = inlined_call_operand.vmem [shape: f32[1,256], index: 2, kind: input, shape index: {}]
  %s3 = inlined_call_operand.vmem [shape: bf16[256,128], index: 3, kind: input, shape index: {}]
  %s4 = inlined_call_operand.vmem [shape: f32[1,128], index: 4, kind: input, shape index: {}]
  %s5 = inlined_call_operand.vmem [shape: f32[16,128], index: 5, kind: output, shape index: {}]
  %s6 = sld [smem:[#allocation0]]
  $region30: #{positionwise_ffn.1} parent=0
    _
  %s8 = ssub.s32 1, %s6
  %s9 = scalar_select 0, %s8, %s6
  // Predicated region
  $region2: #{positionwise_ffn.1} parent=0 // pred_check
    _
  $region3: #{positionwise_ffn.1} parent=0 // pred_check_branch
    %11 = sbr.rel (0) target = $region5
  $region4: #{positionwise_ffn.1} parent=0 // pred_region
    _
  $region5: #{positionwise_ffn.1} parent=0 // pred_fallthru
    _
  // Predicated region
  $region6: #{positionwise_ffn.1} parent=0 // pred_check
    _
  $region7: #{positionwise_ffn.1} parent=0 // pred_check_branch
    %13 = sbr.rel (0) target = $region9
  $region8: #{positionwise_ffn.1} parent=0 // pred_region
    _
  $region9: #{positionwise_ffn.1} parent=0 // pred_fallthru
    _
  // Predicated region
  $region10: #{positionwise_ffn.1} parent=0 // pred_check
    _
  $region11: #{positionwise_ffn.1} parent=0 // pred_check_branch
    %15 = sbr.rel (0) target = $region13
  $region12: #{positionwise_ffn.1} parent=0 // pred_region
    _
  $region13: #{positionwise_ffn.1} parent=0 // pred_fallthru
    _
  // Predicated region
  $region14: #{positionwise_ffn.1} parent=0 // pred_check
    _
  $region15: #{positionwise_ffn.1} parent=0 // pred_check_branch
    %17 = sbr.rel (0) target = $region17
  $region16: #{positionwise_ffn.1} parent=0 // pred_region
    _
  $region17: #{positionwise_ffn.1} parent=0 // pred_fallthru
    _
  // Predicated region
  $region18: #{positionwise_ffn.1} parent=0 // pred_check
    _
  $region19: #{positionwise_ffn.1} parent=0 // pred_check_branch
    %19 = sbr.rel (0) target = $region21
  $region20: #{positionwise_ffn.1} parent=0 // pred_region
    _
  $region21: #{positionwise_ffn.1} parent=0 // pred_fallthru
    _
  %v21 = vld [vmem:[%s0] sm:$0xff]
  %v22 = vld [vmem:[%s0 + $0x8] sm:$0xff]
  %v23 = vpack.c.bf16 %v22, %v21
  %v24 = vld [vmem:[%s1] sm:$0xff]
  %v25 = vld [vmem:[%s1 + $0x8] sm:$0xff]
  %v26 = vld [vmem:[%s1 + $0x10] sm:$0xff]
  %v27 = vld [vmem:[%s1 + $0x18] sm:$0xff]
  %v28 = vld [vmem:[%s1 + $0x20] sm:$0xff]
  %v29 = vld [vmem:[%s1 + $0x28] sm:$0xff]
  %v30 = vld [vmem:[%s1 + $0x30] sm:$0xff]
  %v31 = vld [vmem:[%s1 + $0x38] sm:$0xff]
  %v32 = vld [vmem:[%s1 + $0x40] sm:$0xff]
  %v33 = vld [vmem:[%s1 + $0x48] sm:$0xff]
  %v34 = vld [vmem:[%s1 + $0x50] sm:$0xff]
  %v35 = vld [vmem:[%s1 + $0x58] sm:$0xff]
  %v36 = vld [vmem:[%s1 + $0x60] sm:$0xff]
  %v37 = vld [vmem:[%s1 + $0x68] sm:$0xff]
  %v38 = vld [vmem:[%s1 + $0x70] sm:$0xff]
  %v39 = vld [vmem:[%s1 + $0x78] sm:$0xff]
  %v40 = vld [vmem:[%s2] sm:$0x3]
  %v42 = vlaneseq
  %v43 = vshrl.u32 %v42, 7
  %v44 = vsub.s32 0, %v43
  %v45 = vrot.slane %v40, %v44
  %v46 = vlaneseq
  %v47 = vshrl.u32 %v46, 7
  %v48 = vsub.s32 1, %v47
  %v49 = vrot.slane %v40, %v48
  %v68 = vunpack.c.l.b16 %v24
  %v69 = vunpack.c.h.b16 %v24
  %v70 = vunpack.c.l.b16 %v25
  %v71 = vunpack.c.h.b16 %v25
  %v72 = vunpack.c.l.b16 %v26
  %v73 = vunpack.c.h.b16 %v26
  %v74 = vunpack.c.l.b16 %v27
  %v75 = vunpack.c.h.b16 %v27
  %v76 = vunpack.c.l.b16 %v28
  %v77 = vunpack.c.h.b16 %v28
  %v78 = vunpack.c.l.b16 %v29
  %v79 = vunpack.c.h.b16 %v29
  %v80 = vunpack.c.l.b16 %v30
  %v81 = vunpack.c.h.b16 %v30
  %v82 = vunpack.c.l.b16 %v31
  %v83 = vunpack.c.h.b16 %v31
  %v84 = vunpack.c.l.b16 %v32
  %v85 = vunpack.c.h.b16 %v32
  %v86 = vunpack.c.l.b16 %v33
  %v87 = vunpack.c.h.b16 %v33
  %v88 = vunpack.c.l.b16 %v34
  %v89 = vunpack.c.h.b16 %v34
  %v90 = vunpack.c.l.b16 %v35
  %v91 = vunpack.c.h.b16 %v35
  %v92 = vunpack.c.l.b16 %v36
  %v93 = vunpack.c.h.b16 %v36
  %v94 = vunpack.c.l.b16 %v37
  %v95 = vunpack.c.h.b16 %v37
  %v96 = vunpack.c.l.b16 %v38
  %v97 = vunpack.c.h.b16 %v38
  %v98 = vunpack.c.l.b16 %v39
  %v99 = vunpack.c.h.b16 %v39
  %v100 = vpack.c.b16 %v70, %v68
  %v101 = vpack.c.b16 %v71, %v69
  %v102 = vpack.c.b16 %v74, %v72
  %v103 = vpack.c.b16 %v75, %v73
  %v104 = vpack.c.b16 %v78, %v76
  %v105 = vpack.c.b16 %v79, %v77
  %v106 = vpack.c.b16 %v82, %v80
  %v107 = vpack.c.b16 %v83, %v81
  %v108 = vpack.c.b16 %v86, %v84
  %v109 = vpack.c.b16 %v87, %v85
  %v110 = vpack.c.b16 %v90, %v88
  %v111 = vpack.c.b16 %v91, %v89
  %v112 = vpack.c.b16 %v94, %v92
  %v113 = vpack.c.b16 %v95, %v93
  %v114 = vpack.c.b16 %v98, %v96
  %v115 = vpack.c.b16 %v99, %v97
  %132 = vmatprep.subr.bf16.mxu0 %v101
  %133 = vmatpush1.bf16.msra.mxu0 %v100
  %134 = vmatprep.subr.bf16.mxu0 %v103
  %135 = vmatpush1.bf16.msra.mxu0 %v102
  %136 = vmatprep.subr.bf16.mxu0 %v105
  %137 = vmatpush1.bf16.msra.mxu0 %v104
  %138 = vmatprep.subr.bf16.mxu0 %v107
  %139 = vmatpush1.bf16.msra.mxu0 %v106
  %140 = vmatprep.subr.bf16.mxu0 %v109
  %141 = vmatpush1.bf16.msra.mxu0 %v108
  %142 = vmatprep.subr.bf16.mxu0 %v111
  %143 = vmatpush1.bf16.msra.mxu0 %v110
  %144 = vmatprep.subr.bf16.mxu0 %v113
  %145 = vmatpush1.bf16.msra.mxu0 %v112
  %146 = vmatprep.subr.bf16.mxu0 %v115
  %147 = vmatpush1.bf16.msra.mxu0 %v114
  %148 = vmatprep.subr.bf16.mxu0 0
  %149 = vmatpush1.bf16.msra.mxu0 0
  %150 = vmatprep.subr.bf16.mxu0 0
  %151 = vmatpush1.bf16.msra.mxu0 0
  %152 = vmatprep.subr.bf16.mxu0 0
  %153 = vmatpush1.bf16.msra.mxu0 0
  %154 = vmatprep.subr.bf16.mxu0 0
  %155 = vmatpush1.bf16.msra.mxu0 0
  %156 = vmatprep.subr.bf16.mxu0 0
  %157 = vmatpush1.bf16.msra.mxu0 0
  %158 = vmatprep.subr.bf16.mxu0 0
  %159 = vmatpush1.bf16.msra.mxu0 0
  %160 = vmatprep.subr.bf16.mxu0 0
  %161 = vmatpush1.bf16.msra.mxu0 0
  %162 = vmatprep.subr.bf16.mxu0 0
  %163 = vmatpush1.bf16.msra.mxu0 0
  %164 = vmatprep.mubr.bf16.mxu0 0
  %165 = vmatmul.mubr.bf16.gmra.mrb[0].mxu0 %v23
  %v166 = vpop.f32.mrb[0].mxu0
  %v167 = vadd.f32 %v45, %v166
  %v168 = vpop.f32.mrb[0].mxu0
  %v169 = vadd.f32 %v49, %v168
  %v170 = vpop.f32.mrb[0].mxu0
  %v171 = vadd.f32 %v45, %v170
  %v172 = vpop.f32.mrb[0].mxu0
  %v173 = vadd.f32 %v49, %v172
  %174 = vdwg.mxu0
  %v175 = vmax.f32 %v167, 0.0
  %v176 = vmax.f32 %v169, 0.0
  %v177 = vmax.f32 %v171, 0.0
  %v178 = vmax.f32 %v173, 0.0
  %v179 = vpack.c.bf16 %v177, %v175
  %v180 = vpack.c.bf16 %v178, %v176
  %v181 = vld [vmem:[%s3] sm:$0xf]
  %v182 = vld [vmem:[%s3 + $0x4] sm:$0xf]
  %v183 = vld [vmem:[%s3 + $0x8] sm:$0xf]
  %v184 = vld [vmem:[%s3 + $0xc] sm:$0xf]
  %v185 = vld [vmem:[%s3 + $0x10] sm:$0xf]
  %v186 = vld [vmem:[%s3 + $0x14] sm:$0xf]
  %v187 = vld [vmem:[%s3 + $0x18] sm:$0xf]
  %v188 = vld [vmem:[%s3 + $0x1c] sm:$0xf]
  %v189 = vld [vmem:[%s3 + $0x20] sm:$0xf]
  %v190 = vld [vmem:[%s3 + $0x24] sm:$0xf]
  %v191 = vld [vmem:[%s3 + $0x28] sm:$0xf]
  %v192 = vld [vmem:[%s3 + $0x2c] sm:$0xf]
  %v193 = vld [vmem:[%s3 + $0x30] sm:$0xf]
  %v194 = vld [vmem:[%s3 + $0x34] sm:$0xf]
  %v195 = vld [vmem:[%s3 + $0x38] sm:$0xf]
  %v196 = vld [vmem:[%s3 + $0x3c] sm:$0xf]
  %v197 = vld [vmem:[%s3 + $0x40] sm:$0xf]
  %v198 = vld [vmem:[%s3 + $0x44] sm:$0xf]
  %v199 = vld [vmem:[%s3 + $0x48] sm:$0xf]
  %v200 = vld [vmem:[%s3 + $0x4c] sm:$0xf]
  %v201 = vld [vmem:[%s3 + $0x50] sm:$0xf]
  %v202 = vld [vmem:[%s3 + $0x54] sm:$0xf]
  %v203 = vld [vmem:[%s3 + $0x58] sm:$0xf]
  %v204 = vld [vmem:[%s3 + $0x5c] sm:$0xf]
  %v205 = vld [vmem:[%s3 + $0x60] sm:$0xf]
  %v206 = vld [vmem:[%s3 + $0x64] sm:$0xf]
  %v207 = vld [vmem:[%s3 + $0x68] sm:$0xf]
  %v208 = vld [vmem:[%s3 + $0x6c] sm:$0xf]
  %v209 = vld [vmem:[%s3 + $0x70] sm:$0xf]
  %v210 = vld [vmem:[%s3 + $0x74] sm:$0xf]
  %v211 = vld [vmem:[%s3 + $0x78] sm:$0xf]
  %v212 = vld [vmem:[%s3 + $0x7c] sm:$0xf]
  %v213 = vld [vmem:[%s4] sm:$0x1]
  %v215 = vlaneseq
  %v216 = vshrl.u32 %v215, 7
  %v217 = vsub.s32 0, %v216
  %v218 = vrot.slane %v213, %v217
  %v252 = vunpack.c.l.b16 %v181
  %v253 = vunpack.c.l.b16 %v182
  %v254 = vunpack.c.l.b16 %v183
  %v255 = vunpack.c.l.b16 %v184
  %v256 = vunpack.c.l.b16 %v185
  %v257 = vunpack.c.l.b16 %v186
  %v258 = vunpack.c.l.b16 %v187
  %v259 = vunpack.c.l.b16 %v188
  %v260 = vunpack.c.l.b16 %v189
  %v261 = vunpack.c.l.b16 %v190
  %v262 = vunpack.c.l.b16 %v191
  %v263 = vunpack.c.l.b16 %v192
  %v264 = vunpack.c.l.b16 %v193
  %v265 = vunpack.c.l.b16 %v194
  %v266 = vunpack.c.l.b16 %v195
  %v267 = vunpack.c.l.b16 %v196
  %v268 = vunpack.c.l.b16 %v197
  %v269 = vunpack.c.l.b16 %v198
  %v270 = vunpack.c.l.b16 %v199
  %v271 = vunpack.c.l.b16 %v200
  %v272 = vunpack.c.l.b16 %v201
  %v273 = vunpack.c.l.b16 %v202
  %v274 = vunpack.c.l.b16 %v203
  %v275 = vunpack.c.l.b16 %v204
  %v276 = vunpack.c.l.b16 %v205
  %v277 = vunpack.c.l.b16 %v206
  %v278 = vunpack.c.l.b16 %v207
  %v279 = vunpack.c.l.b16 %v208
  %v280 = vunpack.c.l.b16 %v209
  %v281 = vunpack.c.l.b16 %v210
  %v282 = vunpack.c.l.b16 %v211
  %v283 = vunpack.c.l.b16 %v212
  %v284 = vpack.c.b16 %v253, %v252
  %v285 = vpack.c.b16 %v255, %v254
  %v286 = vpack.c.b16 %v257, %v256
  %v287 = vpack.c.b16 %v259, %v258
  %v288 = vpack.c.b16 %v261, %v260
  %v289 = vpack.c.b16 %v263, %v262
  %v290 = vpack.c.b16 %v265, %v264
  %v291 = vpack.c.b16 %v267, %v266
  %v292 = vpack.c.b16 %v269, %v268
  %v293 = vpack.c.b16 %v271, %v270
  %v294 = vpack.c.b16 %v273, %v272
  %v295 = vpack.c.b16 %v275, %v274
  %v296 = vpack.c.b16 %v277, %v276
  %v297 = vpack.c.b16 %v279, %v278
  %v298 = vpack.c.b16 %v281, %v280
  %v299 = vpack.c.b16 %v283, %v282
  %316 = vmatprep.subr.bf16.mxu0 0
  %317 = vmatpush1.bf16.msra.mxu0 %v284
  %318 = vmatprep.subr.bf16.mxu0 0
  %319 = vmatpush1.bf16.msra.mxu0 %v285
  %320 = vmatprep.subr.bf16.mxu0 0
  %321 = vmatpush1.bf16.msra.mxu0 %v286
  %322 = vmatprep.subr.bf16.mxu0 0
  %323 = vmatpush1.bf16.msra.mxu0 %v287
  %324 = vmatprep.subr.bf16.mxu0 0
  %325 = vmatpush1.bf16.msra.mxu0 %v288
  %326 = vmatprep.subr.bf16.mxu0 0
  %327 = vmatpush1.bf16.msra.mxu0 %v289
  %328 = vmatprep.subr.bf16.mxu0 0
  %329 = vmatpush1.bf16.msra.mxu0 %v290
  %330 = vmatprep.subr.bf16.mxu0 0
  %331 = vmatpush1.bf16.msra.mxu0 %v291
  %332 = vmatprep.subr.bf16.mxu0 0
  %333 = vmatpush1.bf16.msra.mxu0 %v292
  %334 = vmatprep.subr.bf16.mxu0 0
  %335 = vmatpush1.bf16.msra.mxu0 %v293
  %336 = vmatprep.subr.bf16.mxu0 0
  %337 = vmatpush1.bf16.msra.mxu0 %v294
  %338 = vmatprep.subr.bf16.mxu0 0
  %339 = vmatpush1.bf16.msra.mxu0 %v295
  %340 = vmatprep.subr.bf16.mxu0 0
  %341 = vmatpush1.bf16.msra.mxu0 %v296
  %342 = vmatprep.subr.bf16.mxu0 0
  %343 = vmatpush1.bf16.msra.mxu0 %v297
  %344 = vmatprep.subr.bf16.mxu0 0
  %345 = vmatpush1.bf16.msra.mxu0 %v298
  %346 = vmatprep.subr.bf16.mxu0 0
  %347 = vmatpush1.bf16.msra.mxu0 %v299
  %348 = vmatprep.mubr.bf16.mxu0 %v180
  %349 = vmatmul.mubr.bf16.gmra.mrb[0].mxu0 %v179
  %v350 = vpop.f32.mrb[0].mxu0
  %v351 = vadd.f32 %v218, %v350
  %v352 = vpop.f32.mrb[0].mxu0
  %v353 = vpop.f32.mrb[0].mxu0
  %v354 = vadd.f32 %v218, %v353
  %v355 = vpop.f32.mrb[0].mxu0
  %356 = vdwg.mxu0
  %357 = vst [vmem:[%s5] sm:$0xff] %v351
  %358 = vst [vmem:[%s5 + $0x8] sm:$0xff] %v354
  // Predicated region
  $region22: #{positionwise_ffn.1} parent=0 // pred_check
    _
  $region23: #{positionwise_ffn.1} parent=0 // pred_check_branch
    %360 = sbr.rel (0) target = $region25
  $region24: #{positionwise_ffn.1} parent=0 // pred_region
    _
  $region25: #{positionwise_ffn.1} parent=0 // pred_fallthru
    _
  // Predicated region
  $region26: #{positionwise_ffn.1} parent=0 // pred_check
    _
  $region27: #{positionwise_ffn.1} parent=0 // pred_check_branch
    %362 = sbr.rel (0) target = $region29
  $region28: #{positionwise_ffn.1} parent=0 // pred_region
    _
  $region29: #{positionwise_ffn.1} parent=0 // pred_fallthru
    _

</llo_original>
